<compile_context>
chip_gen: v7x
topology: tpu7x:2x2x1
jax: 0.10.0
libtpu: 0.0.40
codegen_flags: <defaults>
</compile_context>

<pallas_src>
import functools

import numpy as np
import jax
import jax.numpy as jnp
from jax.experimental import pallas as pl
from jax.experimental.pallas import tpu as pltpu

EPS = 1e-5


def _fused_convnet_kernel(xsT_ref, w1T_ref, gsel_ref, w2T_ref, bn_ref, o_ref,
                          *, n, m1, m2, p2):
    """conv1+BN1+ReLU -> conv2+BN2+ReLU -> NCHW flatten, entirely in VMEM.

    Transposed layout: channels on sublanes, (batch * spatial) on lanes.

    xsT_ref:  (9*C_in, m1) bf16  layer-1 im2col, rows (kh,kw,c), cols (n,oh1,ow1)
    w1T_ref:  (16, 9*C_in) bf16  layer-1 weights, columns matching xsT rows
    gsel_ref: (m1, 9*m2)   bf16  stacked 0/1 selection: col k*m2+r picks y1 col src(r,k)
    w2T_ref:  (9, 16, 16)  bf16  layer-2 per-tap weights, [k][oc, ic]
    bn_ref:   (16, 4)      f32   columns [gamma1, beta1, gamma2, beta2]
    o_ref:    (n, 16, p2)  f32   o_ref[b, c, s] = flattened_out[b, c*p2 + s]
    """
    f32 = jnp.float32
    bf16 = jnp.bfloat16

    # ---- layer 1: ONE MXU matmul (conv bias is cancelled by training-mode BN) ----------
    acc1 = jnp.dot(w1T_ref[...], xsT_ref[...], preferred_element_type=f32)   # (16, m1)

    # BN1: batch stats over the m1 = N*7*7 lanes (biased var), folded to scale/shift.
    mean1 = jnp.sum(acc1, axis=1, keepdims=True) * (1.0 / m1)
    cent1 = acc1 - mean1
    var1 = jnp.sum(cent1 * cent1, axis=1, keepdims=True) * (1.0 / m1)
    scale1 = bn_ref[:, 0:1] * jax.lax.rsqrt(var1 + EPS)
    shift1 = bn_ref[:, 1:2] - mean1 * scale1
    y1 = jnp.maximum(acc1 * scale1 + shift1, 0.0)                            # (16, m1) f32

    # ---- layer 2: ONE stacked gather matmul, then 9 tiny per-tap weight matmuls --------
    gathered = jnp.dot(y1.astype(bf16), gsel_ref[...],
                       preferred_element_type=f32)                           # (16, 9*m2)
    acc2 = jnp.dot(w2T_ref[0], gathered[:, 0:m2].astype(bf16),
                   preferred_element_type=f32)                               # (16, m2)
    for k in range(1, 9):
        acc2 = acc2 + jnp.dot(w2T_ref[k],
                              gathered[:, k * m2:(k + 1) * m2].astype(bf16),
                              preferred_element_type=f32)

    # BN2 over the m2 = N*3*3 lanes + ReLU.
    mean2 = jnp.sum(acc2, axis=1, keepdims=True) * (1.0 / m2)
    cent2 = acc2 - mean2
    var2 = jnp.sum(cent2 * cent2, axis=1, keepdims=True) * (1.0 / m2)
    scale2 = bn_ref[:, 2:3] * jax.lax.rsqrt(var2 + EPS)
    shift2 = bn_ref[:, 3:4] - mean2 * scale2
    z = jnp.maximum(acc2 * scale2 + shift2, 0.0)                             # (16, m2) f32

    # ---- NCHW flatten: per-batch lane-slice stores (no matmuls, no in-kernel transpose).
    for b in range(n):
        o_ref[b, :, :] = z[:, b * p2:(b + 1) * p2]


def _gather_selection(n, oh1, ow1, oh2, ow2):
    """Stacked 0/1 selection matrix G (m1, 9*m2): G[src, k*m2 + r] = 1 where src is the
    y1 column (n, 2*oh2+kh, 2*ow2+kw) needed by layer-2 tap k at output row r."""
    m1, m2 = n * oh1 * ow1, n * oh2 * ow2
    g = np.zeros((m1, 9 * m2), np.float32)
    for kh in range(3):
        for kw in range(3):
            k = kh * 3 + kw
            for b in range(n):
                for i in range(oh2):
                    for j in range(ow2):
                        r = b * oh2 * ow2 + i * ow2 + j
                        src = b * oh1 * ow1 + (2 * i + kh) * ow1 + (2 * j + kw)
                        g[src, k * m2 + r] = 1.0
    return g


def _full_spec(shape):
    nd = len(shape)
    return pl.BlockSpec(shape, lambda i, _nd=nd: (0,) * _nd)


def simple_convnet_forward(x_nchw, params):
    n, c_in, h, w = x_nchw.shape
    assert (h, w) == (16, 16), "kernel is specialized to the module's 16x16 spatial input"
    oh1, ow1 = (h - 3) // 2 + 1, (w - 3) // 2 + 1       # 7, 7
    oh2, ow2 = (oh1 - 3) // 2 + 1, (ow1 - 3) // 2 + 1   # 3, 3
    m1, m2, p2 = n * oh1 * ow1, n * oh2 * ow2, oh2 * ow2

    # Layer-1 im2col, transposed (rows = (kh,kw,c), cols = (n,oh1,ow1)); built from 9
    # strided tap views of the NCHW input — one small fused XLA copy, cast to bf16.
    taps = [x_nchw[:, :, kh:kh + 2 * oh1 - 1:2, kw:kw + 2 * ow1 - 1:2]   # (n, c, 7, 7)
            for kh in range(3) for kw in range(3)]
    xsT = (jnp.stack(taps, axis=0)            # (9, n, c, 7, 7)
           .transpose(0, 2, 1, 3, 4)          # (9, c, n, 7, 7)
           .reshape(9 * c_in, m1)
           .astype(jnp.bfloat16))

    # Weights: layer-1 as one (16, 9*C_in) matrix matching xsT's row order; layer-2 per tap.
    w1T = (jnp.transpose(params["w1"], (0, 2, 3, 1))    # (oc, kh, kw, ic)
           .reshape(16, 9 * c_in).astype(jnp.bfloat16))
    w2T = (jnp.transpose(params["w2"], (2, 3, 0, 1))    # (kh, kw, oc, ic)
           .reshape(9, 16, 16).astype(jnp.bfloat16))
    bn = jnp.stack([params["g1"], params["be1"], params["g2"], params["be2"]],
                   axis=1).astype(jnp.float32)           # (16, 4)

    gsel = jnp.asarray(_gather_selection(n, oh1, ow1, oh2, ow2), jnp.bfloat16)

    operands = (xsT, w1T, gsel, w2T, bn)
    kernel = functools.partial(_fused_convnet_kernel, n=n, m1=m1, m2=m2, p2=p2)
    out3 = pl.pallas_call(
        kernel,
        out_shape=jax.ShapeDtypeStruct((n, 16, p2), jnp.float32),
        grid=(1,),
        in_specs=[_full_spec(op.shape) for op in operands],
        out_specs=_full_spec((n, 16, p2)),
        compiler_params=pltpu.CompilerParams(dimension_semantics=("arbitrary",)),
    )(*operands)
    # Free contiguous reshape to PyTorch's .view(N, -1) NCHW order.
    return out3.reshape(n, 16 * p2)


def reference_forward(x_nchw, params):
    """Pure-JAX reference of the PyTorch training-mode forward (validation only)."""
    def conv(x, w, b):
        y = jax.lax.conv_general_dilated(
            x, w, window_strides=(2, 2), padding="VALID",
            dimension_numbers=("NCHW", "OIHW", "NCHW"),
            precision=jax.lax.Precision.HIGHEST)
        return y + b.reshape(1, -1, 1, 1)

    def bn_relu(y, g, b):
        mean = jnp.mean(y, axis=(0, 2, 3), keepdims=True)
        var = jnp.mean((y - mean) ** 2, axis=(0, 2, 3), keepdims=True)
        yn = (y - mean) * jax.lax.rsqrt(var + EPS) * g.reshape(1, -1, 1, 1) + b.reshape(1, -1, 1, 1)
        return jnp.maximum(yn, 0.0)

    y = bn_relu(conv(x_nchw, params["w1"], params["b1"]), params["g1"], params["be1"])
    y = bn_relu(conv(y, params["w2"], params["b2"]), params["g2"], params["be2"])
    return y.reshape(y.shape[0], -1)


def init_params(key, in_channel=48):
    ks = jax.random.split(key, 8)
    return {
        "w1": 0.05 * jax.random.normal(ks[0], (16, in_channel, 3, 3), jnp.float32),
        "b1": 0.05 * jax.random.normal(ks[1], (16,), jnp.float32),   # unused: cancelled by BN1
        "g1": jax.random.uniform(ks[2], (16,), jnp.float32, 0.5, 1.5),
        "be1": 0.05 * jax.random.normal(ks[3], (16,), jnp.float32),
        "w2": 0.05 * jax.random.normal(ks[4], (16, 16, 3, 3), jnp.float32),
        "b2": 0.05 * jax.random.normal(ks[5], (16,), jnp.float32),   # unused: cancelled by BN2
        "g2": jax.random.uniform(ks[6], (16,), jnp.float32, 0.5, 1.5),
        "be2": 0.05 * jax.random.normal(ks[7], (16,), jnp.float32),
    }


if __name__ == "__main__":
    key = jax.random.PRNGKey(0)
    pkey, xkey = jax.random.split(key)
    params = init_params(pkey, in_channel=48)

    # batch=2, in_channel=48, 16x16 spatial (consistent with the module defaults)
    x = jax.random.normal(xkey, (2, 48, 16, 16), jnp.float32)

    fwd = jax.jit(simple_convnet_forward)
    out = jax.block_until_ready(fwd(x, params))

    # conv1: 16x16 -> 7x7 ; conv2: 7x7 -> 3x3 ; flatten -> 16*3*3 = 144
    assert out.shape == (2, 144), out.shape
    assert bool(jnp.all(jnp.isfinite(out)))

    # Reference uses f32 HIGHEST-precision conv + conv biases; kernel uses bf16 MXU
    # operands (BN renormalizes, so the gap stays well inside this tolerance).
    ref = reference_forward(x, params)
    err = float(jnp.max(jnp.abs(out - ref)))
    assert err < 5e-2, f"max abs err vs reference: {err}"

    print("KERNEL_OK")
</pallas_src>

<mosaic_0001>
module attributes {stable_mosaic.version = 11 : i64} {
  func.func @_fused_convnet_kernel(%arg0: i32, %arg1: memref<432x98xbf16, #tpu.memory_space<vmem>>, %arg2: memref<16x432xbf16, #tpu.memory_space<vmem>>, %arg3: memref<98x162xbf16, #tpu.memory_space<vmem>>, %arg4: memref<9x16x16xbf16, #tpu.memory_space<vmem>>, %arg5: memref<16x4xf32, #tpu.memory_space<vmem>>, %arg6: memref<2x16x9xf32, #tpu.memory_space<vmem>>) attributes {dimension_semantics = [#tpu.dimension_semantics<arbitrary>], iteration_bounds = array<i64: 1>, scalar_prefetch = 0 : i64, scratch_operands = 0 : i64, tpu.core_type = #tpu.core_type<tc>, window_params = [{pipeline_mode = #tpu.pipeline_mode<synchronous>, transform_indices = @transform_0, window_bounds = array<i64: 432, 98>}, {pipeline_mode = #tpu.pipeline_mode<synchronous>, transform_indices = @transform_1, window_bounds = array<i64: 16, 432>}, {pipeline_mode = #tpu.pipeline_mode<synchronous>, transform_indices = @transform_2, window_bounds = array<i64: 98, 162>}, {pipeline_mode = #tpu.pipeline_mode<synchronous>, transform_indices = @transform_3, window_bounds = array<i64: 9, 16, 16>}, {pipeline_mode = #tpu.pipeline_mode<synchronous>, transform_indices = @transform_4, window_bounds = array<i64: 16, 4>}, {pipeline_mode = #tpu.pipeline_mode<synchronous>, transform_indices = @transform_5, window_bounds = array<i64: 2, 16, 9>}]} {
    %c0 = arith.constant 0 : index
    %c0_0 = arith.constant 0 : index
    %0 = vector.load %arg2[%c0, %c0_0] : memref<16x432xbf16, #tpu.memory_space<vmem>>, vector<16x432xbf16>
    %c0_1 = arith.constant 0 : index
    %c0_2 = arith.constant 0 : index
    %1 = vector.load %arg1[%c0_1, %c0_2] : memref<432x98xbf16, #tpu.memory_space<vmem>>, vector<432x98xbf16>
    %cst = arith.constant dense<0.000000e+00> : vector<16x98xf32>
    %2 = tpu.matmul %0, %1, %cst {dimension_numbers = #tpu.dot_dimension_numbers<[1], [0], [0], [1], [0, 0, 1, 1], [], []>} : vector<16x432xbf16>, vector<432x98xbf16>, vector<16x98xf32> -> vector<16x98xf32>
    %cst_3 = arith.constant dense<0.000000e+00> : vector<16xf32>
    %3 = vector.multi_reduction <add>, %2, %cst_3 [1] : vector<16x98xf32> to vector<16xf32>
    %4 = vector.shape_cast %3 : vector<16xf32> to vector<16x1xf32>
    %cst_4 = arith.constant 0.0102040814 : f32
    %5 = vector.broadcast %cst_4 : f32 to vector<16x1xf32>
    %6 = arith.mulf %4, %5 : vector<16x1xf32>
    %7 = vector.broadcast %6 : vector<16x1xf32> to vector<16x98xf32>
    %8 = arith.subf %2, %7 : vector<16x98xf32>
    %9 = arith.mulf %8, %8 : vector<16x98xf32>
    %cst_5 = arith.constant dense<0.000000e+00> : vector<16xf32>
    %10 = vector.multi_reduction <add>, %9, %cst_5 [1] : vector<16x98xf32> to vector<16xf32>
    %11 = vector.shape_cast %10 : vector<16xf32> to vector<16x1xf32>
    %cst_6 = arith.constant 0.0102040814 : f32
    %12 = vector.broadcast %cst_6 : f32 to vector<16x1xf32>
    %13 = arith.mulf %11, %12 : vector<16x1xf32>
    %c0_7 = arith.constant 0 : index
    %c0_8 = arith.constant 0 : index
    %14 = vector.load %arg5[%c0_7, %c0_8] : memref<16x4xf32, #tpu.memory_space<vmem>>, vector<16x1xf32>
    %cst_9 = arith.constant 9.99999974E-6 : f32
    %15 = vector.broadcast %cst_9 : f32 to vector<16x1xf32>
    %16 = arith.addf %13, %15 : vector<16x1xf32>
    %17 = math.rsqrt %16 : vector<16x1xf32>
    %18 = arith.mulf %14, %17 : vector<16x1xf32>
    %c0_10 = arith.constant 0 : index
    %c1 = arith.constant 1 : index
    %19 = vector.load %arg5[%c0_10, %c1] : memref<16x4xf32, #tpu.memory_space<vmem>>, vector<16x1xf32>
    %20 = arith.mulf %6, %18 : vector<16x1xf32>
    %21 = arith.subf %19, %20 : vector<16x1xf32>
    %22 = vector.broadcast %18 : vector<16x1xf32> to vector<16x98xf32>
    %23 = arith.mulf %2, %22 : vector<16x98xf32>
    %24 = vector.broadcast %21 : vector<16x1xf32> to vector<16x98xf32>
    %25 = arith.addf %23, %24 : vector<16x98xf32>
    %cst_11 = arith.constant 0.000000e+00 : f32
    %26 = vector.broadcast %cst_11 : f32 to vector<16x98xf32>
    %27 = arith.maximumf %25, %26 : vector<16x98xf32>
    %28 = arith.truncf %27 : vector<16x98xf32> to vector<16x98xbf16>
    %c0_12 = arith.constant 0 : index
    %c0_13 = arith.constant 0 : index
    %29 = vector.load %arg3[%c0_12, %c0_13] : memref<98x162xbf16, #tpu.memory_space<vmem>>, vector<98x162xbf16>
    %cst_14 = arith.constant dense<0.000000e+00> : vector<16x162xf32>
    %30 = tpu.matmul %28, %29, %cst_14 {dimension_numbers = #tpu.dot_dimension_numbers<[1], [0], [0], [1], [0, 0, 1, 1], [], []>} : vector<16x98xbf16>, vector<98x162xbf16>, vector<16x162xf32> -> vector<16x162xf32>
    %c0_15 = arith.constant 0 : index
    %c0_16 = arith.constant 0 : index
    %c0_17 = arith.constant 0 : index
    %31 = vector.load %arg4[%c0_15, %c0_16, %c0_17] : memref<9x16x16xbf16, #tpu.memory_space<vmem>>, vector<1x16x16xbf16>
    %32 = vector.shape_cast %31 : vector<1x16x16xbf16> to vector<16x16xbf16>
    %33 = vector.extract_strided_slice %30 {offsets = [0, 0], sizes = [16, 18], strides = [1, 1]} : vector<16x162xf32> to vector<16x18xf32>
    %34 = arith.truncf %33 : vector<16x18xf32> to vector<16x18xbf16>
    %cst_18 = arith.constant dense<0.000000e+00> : vector<16x18xf32>
    %35 = tpu.matmul %32, %34, %cst_18 {dimension_numbers = #tpu.dot_dimension_numbers<[1], [0], [0], [1], [0, 0, 1, 1], [], []>} : vector<16x16xbf16>, vector<16x18xbf16>, vector<16x18xf32> -> vector<16x18xf32>
    %c1_19 = arith.constant 1 : index
    %c0_20 = arith.constant 0 : index
    %c0_21 = arith.constant 0 : index
    %36 = vector.load %arg4[%c1_19, %c0_20, %c0_21] : memref<9x16x16xbf16, #tpu.memory_space<vmem>>, vector<1x16x16xbf16>
    %37 = vector.shape_cast %36 : vector<1x16x16xbf16> to vector<16x16xbf16>
    %38 = vector.extract_strided_slice %30 {offsets = [0, 18], sizes = [16, 18], strides = [1, 1]} : vector<16x162xf32> to vector<16x18xf32>
    %39 = arith.truncf %38 : vector<16x18xf32> to vector<16x18xbf16>
    %cst_22 = arith.constant dense<0.000000e+00> : vector<16x18xf32>
    %40 = tpu.matmul %37, %39, %cst_22 {dimension_numbers = #tpu.dot_dimension_numbers<[1], [0], [0], [1], [0, 0, 1, 1], [], []>} : vector<16x16xbf16>, vector<16x18xbf16>, vector<16x18xf32> -> vector<16x18xf32>
    %41 = arith.addf %35, %40 : vector<16x18xf32>
    %c2 = arith.constant 2 : index
    %c0_23 = arith.constant 0 : index
    %c0_24 = arith.constant 0 : index
    %42 = vector.load %arg4[%c2, %c0_23, %c0_24] : memref<9x16x16xbf16, #tpu.memory_space<vmem>>, vector<1x16x16xbf16>
    %43 = vector.shape_cast %42 : vector<1x16x16xbf16> to vector<16x16xbf16>
    %44 = vector.extract_strided_slice %30 {offsets = [0, 36], sizes = [16, 18], strides = [1, 1]} : vector<16x162xf32> to vector<16x18xf32>
    %45 = arith.truncf %44 : vector<16x18xf32> to vector<16x18xbf16>
    %cst_25 = arith.constant dense<0.000000e+00> : vector<16x18xf32>
    %46 = tpu.matmul %43, %45, %cst_25 {dimension_numbers = #tpu.dot_dimension_numbers<[1], [0], [0], [1], [0, 0, 1, 1], [], []>} : vector<16x16xbf16>, vector<16x18xbf16>, vector<16x18xf32> -> vector<16x18xf32>
    %47 = arith.addf %41, %46 : vector<16x18xf32>
    %c3 = arith.constant 3 : index
    %c0_26 = arith.constant 0 : index
    %c0_27 = arith.constant 0 : index
    %48 = vector.load %arg4[%c3, %c0_26, %c0_27] : memref<9x16x16xbf16, #tpu.memory_space<vmem>>, vector<1x16x16xbf16>
    %49 = vector.shape_cast %48 : vector<1x16x16xbf16> to vector<16x16xbf16>
    %50 = vector.extract_strided_slice %30 {offsets = [0, 54], sizes = [16, 18], strides = [1, 1]} : vector<16x162xf32> to vector<16x18xf32>
    %51 = arith.truncf %50 : vector<16x18xf32> to vector<16x18xbf16>
    %cst_28 = arith.constant dense<0.000000e+00> : vector<16x18xf32>
    %52 = tpu.matmul %49, %51, %cst_28 {dimension_numbers = #tpu.dot_dimension_numbers<[1], [0], [0], [1], [0, 0, 1, 1], [], []>} : vector<16x16xbf16>, vector<16x18xbf16>, vector<16x18xf32> -> vector<16x18xf32>
    %53 = arith.addf %47, %52 : vector<16x18xf32>
    %c4 = arith.constant 4 : index
    %c0_29 = arith.constant 0 : index
    %c0_30 = arith.constant 0 : index
    %54 = vector.load %arg4[%c4, %c0_29, %c0_30] : memref<9x16x16xbf16, #tpu.memory_space<vmem>>, vector<1x16x16xbf16>
    %55 = vector.shape_cast %54 : vector<1x16x16xbf16> to vector<16x16xbf16>
    %56 = vector.extract_strided_slice %30 {offsets = [0, 72], sizes = [16, 18], strides = [1, 1]} : vector<16x162xf32> to vector<16x18xf32>
    %57 = arith.truncf %56 : vector<16x18xf32> to vector<16x18xbf16>
    %cst_31 = arith.constant dense<0.000000e+00> : vector<16x18xf32>
    %58 = tpu.matmul %55, %57, %cst_31 {dimension_numbers = #tpu.dot_dimension_numbers<[1], [0], [0], [1], [0, 0, 1, 1], [], []>} : vector<16x16xbf16>, vector<16x18xbf16>, vector<16x18xf32> -> vector<16x18xf32>
    %59 = arith.addf %53, %58 : vector<16x18xf32>
    %c5 = arith.constant 5 : index
    %c0_32 = arith.constant 0 : index
    %c0_33 = arith.constant 0 : index
    %60 = vector.load %arg4[%c5, %c0_32, %c0_33] : memref<9x16x16xbf16, #tpu.memory_space<vmem>>, vector<1x16x16xbf16>
    %61 = vector.shape_cast %60 : vector<1x16x16xbf16> to vector<16x16xbf16>
    %62 = vector.extract_strided_slice %30 {offsets = [0, 90], sizes = [16, 18], strides = [1, 1]} : vector<16x162xf32> to vector<16x18xf32>
    %63 = arith.truncf %62 : vector<16x18xf32> to vector<16x18xbf16>
    %cst_34 = arith.constant dense<0.000000e+00> : vector<16x18xf32>
    %64 = tpu.matmul %61, %63, %cst_34 {dimension_numbers = #tpu.dot_dimension_numbers<[1], [0], [0], [1], [0, 0, 1, 1], [], []>} : vector<16x16xbf16>, vector<16x18xbf16>, vector<16x18xf32> -> vector<16x18xf32>
    %65 = arith.addf %59, %64 : vector<16x18xf32>
    %c6 = arith.constant 6 : index
    %c0_35 = arith.constant 0 : index
    %c0_36 = arith.constant 0 : index
    %66 = vector.load %arg4[%c6, %c0_35, %c0_36] : memref<9x16x16xbf16, #tpu.memory_space<vmem>>, vector<1x16x16xbf16>
    %67 = vector.shape_cast %66 : vector<1x16x16xbf16> to vector<16x16xbf16>
    %68 = vector.extract_strided_slice %30 {offsets = [0, 108], sizes = [16, 18], strides = [1, 1]} : vector<16x162xf32> to vector<16x18xf32>
    %69 = arith.truncf %68 : vector<16x18xf32> to vector<16x18xbf16>
    %cst_37 = arith.constant dense<0.000000e+00> : vector<16x18xf32>
    %70 = tpu.matmul %67, %69, %cst_37 {dimension_numbers = #tpu.dot_dimension_numbers<[1], [0], [0], [1], [0, 0, 1, 1], [], []>} : vector<16x16xbf16>, vector<16x18xbf16>, vector<16x18xf32> -> vector<16x18xf32>
    %71 = arith.addf %65, %70 : vector<16x18xf32>
    %c7 = arith.constant 7 : index
    %c0_38 = arith.constant 0 : index
    %c0_39 = arith.constant 0 : index
    %72 = vector.load %arg4[%c7, %c0_38, %c0_39] : memref<9x16x16xbf16, #tpu.memory_space<vmem>>, vector<1x16x16xbf16>
    %73 = vector.shape_cast %72 : vector<1x16x16xbf16> to vector<16x16xbf16>
    %74 = vector.extract_strided_slice %30 {offsets = [0, 126], sizes = [16, 18], strides = [1, 1]} : vector<16x162xf32> to vector<16x18xf32>
    %75 = arith.truncf %74 : vector<16x18xf32> to vector<16x18xbf16>
    %cst_40 = arith.constant dense<0.000000e+00> : vector<16x18xf32>
    %76 = tpu.matmul %73, %75, %cst_40 {dimension_numbers = #tpu.dot_dimension_numbers<[1], [0], [0], [1], [0, 0, 1, 1], [], []>} : vector<16x16xbf16>, vector<16x18xbf16>, vector<16x18xf32> -> vector<16x18xf32>
    %77 = arith.addf %71, %76 : vector<16x18xf32>
    %c8 = arith.constant 8 : index
    %c0_41 = arith.constant 0 : index
    %c0_42 = arith.constant 0 : index
    %78 = vector.load %arg4[%c8, %c0_41, %c0_42] : memref<9x16x16xbf16, #tpu.memory_space<vmem>>, vector<1x16x16xbf16>
    %79 = vector.shape_cast %78 : vector<1x16x16xbf16> to vector<16x16xbf16>
    %80 = vector.extract_strided_slice %30 {offsets = [0, 144], sizes = [16, 18], strides = [1, 1]} : vector<16x162xf32> to vector<16x18xf32>
    %81 = arith.truncf %80 : vector<16x18xf32> to vector<16x18xbf16>
    %cst_43 = arith.constant dense<0.000000e+00> : vector<16x18xf32>
    %82 = tpu.matmul %79, %81, %cst_43 {dimension_numbers = #tpu.dot_dimension_numbers<[1], [0], [0], [1], [0, 0, 1, 1], [], []>} : vector<16x16xbf16>, vector<16x18xbf16>, vector<16x18xf32> -> vector<16x18xf32>
    %83 = arith.addf %77, %82 : vector<16x18xf32>
    %cst_44 = arith.constant dense<0.000000e+00> : vector<16xf32>
    %84 = vector.multi_reduction <add>, %83, %cst_44 [1] : vector<16x18xf32> to vector<16xf32>
    %85 = vector.shape_cast %84 : vector<16xf32> to vector<16x1xf32>
    %cst_45 = arith.constant 0.055555556 : f32
    %86 = vector.broadcast %cst_45 : f32 to vector<16x1xf32>
    %87 = arith.mulf %85, %86 : vector<16x1xf32>
    %88 = vector.broadcast %87 : vector<16x1xf32> to vector<16x18xf32>
    %89 = arith.subf %83, %88 : vector<16x18xf32>
    %90 = arith.mulf %89, %89 : vector<16x18xf32>
    %cst_46 = arith.constant dense<0.000000e+00> : vector<16xf32>
    %91 = vector.multi_reduction <add>, %90, %cst_46 [1] : vector<16x18xf32> to vector<16xf32>
    %92 = vector.shape_cast %91 : vector<16xf32> to vector<16x1xf32>
    %cst_47 = arith.constant 0.055555556 : f32
    %93 = vector.broadcast %cst_47 : f32 to vector<16x1xf32>
    %94 = arith.mulf %92, %93 : vector<16x1xf32>
    %c0_48 = arith.constant 0 : index
    %c2_49 = arith.constant 2 : index
    %95 = vector.load %arg5[%c0_48, %c2_49] : memref<16x4xf32, #tpu.memory_space<vmem>>, vector<16x1xf32>
    %cst_50 = arith.constant 9.99999974E-6 : f32
    %96 = vector.broadcast %cst_50 : f32 to vector<16x1xf32>
    %97 = arith.addf %94, %96 : vector<16x1xf32>
    %98 = math.rsqrt %97 : vector<16x1xf32>
    %99 = arith.mulf %95, %98 : vector<16x1xf32>
    %c0_51 = arith.constant 0 : index
    %c3_52 = arith.constant 3 : index
    %100 = vector.load %arg5[%c0_51, %c3_52] : memref<16x4xf32, #tpu.memory_space<vmem>>, vector<16x1xf32>
    %101 = arith.mulf %87, %99 : vector<16x1xf32>
    %102 = arith.subf %100, %101 : vector<16x1xf32>
    %103 = vector.broadcast %99 : vector<16x1xf32> to vector<16x18xf32>
    %104 = arith.mulf %83, %103 : vector<16x18xf32>
    %105 = vector.broadcast %102 : vector<16x1xf32> to vector<16x18xf32>
    %106 = arith.addf %104, %105 : vector<16x18xf32>
    %cst_53 = arith.constant 0.000000e+00 : f32
    %107 = vector.broadcast %cst_53 : f32 to vector<16x18xf32>
    %108 = arith.maximumf %106, %107 : vector<16x18xf32>
    %109 = vector.extract_strided_slice %108 {offsets = [0, 0], sizes = [16, 9], strides = [1, 1]} : vector<16x18xf32> to vector<16x9xf32>
    %c0_54 = arith.constant 0 : index
    %c0_55 = arith.constant 0 : index
    %c0_56 = arith.constant 0 : index
    %110 = vector.load %arg6[%c0_54, %c0_55, %c0_56] : memref<2x16x9xf32, #tpu.memory_space<vmem>>, vector<1x16x9xf32>
    %111 = vector.shape_cast %110 : vector<1x16x9xf32> to vector<16x9xf32>
    %112 = vector.shape_cast %109 : vector<16x9xf32> to vector<1x16x9xf32>
    tpu.vector_store %arg6[%c0_54, %c0_55, %c0_56], %112 {strides = array<i32>} : memref<2x16x9xf32, #tpu.memory_space<vmem>>, vector<1x16x9xf32>,
    %113 = vector.extract_strided_slice %108 {offsets = [0, 9], sizes = [16, 9], strides = [1, 1]} : vector<16x18xf32> to vector<16x9xf32>
    %c1_57 = arith.constant 1 : index
    %c0_58 = arith.constant 0 : index
    %c0_59 = arith.constant 0 : index
    %114 = vector.load %arg6[%c1_57, %c0_58, %c0_59] : memref<2x16x9xf32, #tpu.memory_space<vmem>>, vector<1x16x9xf32>
    %115 = vector.shape_cast %114 : vector<1x16x9xf32> to vector<16x9xf32>
    %116 = vector.shape_cast %113 : vector<16x9xf32> to vector<1x16x9xf32>
    tpu.vector_store %arg6[%c1_57, %c0_58, %c0_59], %116 {strides = array<i32>} : memref<2x16x9xf32, #tpu.memory_space<vmem>>, vector<1x16x9xf32>,
    return
  }
  func.func @transform_0(%arg0: i32) -> (i32, i32) {
    %c0_i32 = arith.constant 0 : i32
    %c0_i32_0 = arith.constant 0 : i32
    %c0_i32_1 = arith.constant 0 : i32
    return %c0_i32, %c0_i32_0 : i32, i32
  }
  func.func @transform_1(%arg0: i32) -> (i32, i32) {
    %c0_i32 = arith.constant 0 : i32
    %c0_i32_0 = arith.constant 0 : i32
    %c0_i32_1 = arith.constant 0 : i32
    return %c0_i32, %c0_i32_0 : i32, i32
  }
  func.func @transform_2(%arg0: i32) -> (i32, i32) {
    %c0_i32 = arith.constant 0 : i32
    %c0_i32_0 = arith.constant 0 : i32
    %c0_i32_1 = arith.constant 0 : i32
    return %c0_i32, %c0_i32_0 : i32, i32
  }
  func.func @transform_3(%arg0: i32) -> (i32, i32, i32) {
    %c0_i32 = arith.constant 0 : i32
    %c0_i32_0 = arith.constant 0 : i32
    %c0_i32_1 = arith.constant 0 : i32
    %c0_i32_2 = arith.constant 0 : i32
    return %c0_i32, %c0_i32_0, %c0_i32_1 : i32, i32, i32
  }
  func.func @transform_4(%arg0: i32) -> (i32, i32) {
    %c0_i32 = arith.constant 0 : i32
    %c0_i32_0 = arith.constant 0 : i32
    %c0_i32_1 = arith.constant 0 : i32
    return %c0_i32, %c0_i32_0 : i32, i32
  }
  func.func @transform_5(%arg0: i32) -> (i32, i32, i32) {
    %c0_i32 = arith.constant 0 : i32
    %c0_i32_0 = arith.constant 0 : i32
    %c0_i32_1 = arith.constant 0 : i32
    %c0_i32_2 = arith.constant 0 : i32
    return %c0_i32, %c0_i32_0, %c0_i32_1 : i32, i32, i32
  }
}

</mosaic_0001>

<llo_original>
// kernel: simple_convnet_forward.1
$region0: #{simple_convnet_forward.1}
  #allocation0 [shape = 'u32[]', space=smem, size = 0x4, offset = 0x4, fixed_abs, tag = 'smem constant byte address 0x4 - core index']
  #allocation1 [shape = 'u32[144,128]{1,0:T(1,128)}', space=vmem, size = 0x12000, scoped, tag = 'internal scratch']
  %s0 = inlined_call_operand.vmem [shape: bf16[432,98], index: 0, kind: input, shape index: {}]
  %s1 = inlined_call_operand.vmem [shape: bf16[16,432], index: 1, kind: input, shape index: {}]
  %s2 = inlined_call_operand.vmem [shape: bf16[98,162], index: 2, kind: input, shape index: {}]
  %s3 = inlined_call_operand.vmem [shape: bf16[9,16,16], index: 3, kind: input, shape index: {}]
  %s4 = inlined_call_operand.vmem [shape: f32[16,4], index: 4, kind: input, shape index: {}]
  %s5 = inlined_call_operand.vmem [shape: f32[2,16,9], index: 5, kind: output, shape index: {}]
  %s6 = sld [smem:[#allocation0]]
  $region30: #{simple_convnet_forward.1} parent=0
    _
  %s8 = ssub.s32 1, %s6
  %s9 = scalar_select 0, %s8, %s6
  // Predicated region
  $region2: #{simple_convnet_forward.1} parent=0 // pred_check
    _
  $region3: #{simple_convnet_forward.1} parent=0 // pred_check_branch
    %11 = sbr.rel (0) target = $region5
  $region4: #{simple_convnet_forward.1} parent=0 // pred_region
    _
  $region5: #{simple_convnet_forward.1} parent=0 // pred_fallthru
    _
  // Predicated region
  $region6: #{simple_convnet_forward.1} parent=0 // pred_check
    _
  $region7: #{simple_convnet_forward.1} parent=0 // pred_check_branch
    %13 = sbr.rel (0) target = $region9
  $region8: #{simple_convnet_forward.1} parent=0 // pred_region
    _
  $region9: #{simple_convnet_forward.1} parent=0 // pred_fallthru
    _
  // Predicated region
  $region10: #{simple_convnet_forward.1} parent=0 // pred_check
    _
  $region11: #{simple_convnet_forward.1} parent=0 // pred_check_branch
    %15 = sbr.rel (0) target = $region13
  $region12: #{simple_convnet_forward.1} parent=0 // pred_region
    _
  $region13: #{simple_convnet_forward.1} parent=0 // pred_fallthru
    _
  // Predicated region
  $region14: #{simple_convnet_forward.1} parent=0 // pred_check
    _
  $region15: #{simple_convnet_forward.1} parent=0 // pred_check_branch
    %17 = sbr.rel (0) target = $region17
  $region16: #{simple_convnet_forward.1} parent=0 // pred_region
    _
  $region17: #{simple_convnet_forward.1} parent=0 // pred_fallthru
    _
  // Predicated region
  $region18: #{simple_convnet_forward.1} parent=0 // pred_check
    _
  $region19: #{simple_convnet_forward.1} parent=0 // pred_check_branch
    %19 = sbr.rel (0) target = $region21
  $region20: #{simple_convnet_forward.1} parent=0 // pred_region
    _
  $region21: #{simple_convnet_forward.1} parent=0 // pred_fallthru
    _
  %v21 = vld [vmem:[%s1] sm:$0xff]
  %v22 = vld [vmem:[%s1 + $0x8] sm:$0xff]
  %v23 = vld [vmem:[%s1 + $0x10] sm:$0xff]
  %v24 = vld [vmem:[%s1 + $0x18] sm:$0xff]
  %v25 = vld [vmem:[%s0] sm:$0xf]
  %v26 = vld [vmem:[%s0 + $0x4] sm:$0xf]
  %v27 = vld [vmem:[%s0 + $0x8] sm:$0xf]
  %v28 = vld [vmem:[%s0 + $0xc] sm:$0xf]
  %v29 = vld [vmem:[%s0 + $0x10] sm:$0xf]
  %v30 = vld [vmem:[%s0 + $0x14] sm:$0xf]
  %v31 = vld [vmem:[%s0 + $0x18] sm:$0xf]
  %v32 = vld [vmem:[%s0 + $0x1c] sm:$0xf]
  %v33 = vld [vmem:[%s0 + $0x20] sm:$0xf]
  %v34 = vld [vmem:[%s0 + $0x24] sm:$0xf]
  %v35 = vld [vmem:[%s0 + $0x28] sm:$0xf]
  %v36 = vld [vmem:[%s0 + $0x2c] sm:$0xf]
  %v37 = vld [vmem:[%s0 + $0x30] sm:$0xf]
  %v38 = vld [vmem:[%s0 + $0x34] sm:$0xf]
  %v39 = vld [vmem:[%s0 + $0x38] sm:$0xf]
  %v40 = vld [vmem:[%s0 + $0x3c] sm:$0xf]
  %v41 = vld [vmem:[%s0 + $0x40] sm:$0xf]
  %v42 = vld [vmem:[%s0 + $0x44] sm:$0xf]
  %v43 = vld [vmem:[%s0 + $0x48] sm:$0xf]
  %v44 = vld [vmem:[%s0 + $0x4c] sm:$0xf]
  %v45 = vld [vmem:[%s0 + $0x50] sm:$0xf]
  %v46 = vld [vmem:[%s0 + $0x54] sm:$0xf]
  %v47 = vld [vmem:[%s0 + $0x58] sm:$0xf]
  %v48 = vld [vmem:[%s0 + $0x5c] sm:$0xf]
  %v49 = vld [vmem:[%s0 + $0x60] sm:$0xf]
  %v50 = vld [vmem:[%s0 + $0x64] sm:$0xf]
  %v51 = vld [vmem:[%s0 + $0x68] sm:$0xf]
  %v52 = vld [vmem:[%s0 + $0x6c] sm:$0xf]
  %v53 = vld [vmem:[%s0 + $0x70] sm:$0xf]
  %v54 = vld [vmem:[%s0 + $0x74] sm:$0xf]
  %v55 = vld [vmem:[%s0 + $0x78] sm:$0xf]
  %v56 = vld [vmem:[%s0 + $0x7c] sm:$0xf]
  %v57 = vld [vmem:[%s0 + $0x80] sm:$0xf]
  %v58 = vld [vmem:[%s0 + $0x84] sm:$0xf]
  %v59 = vld [vmem:[%s0 + $0x88] sm:$0xf]
  %v60 = vld [vmem:[%s0 + $0x8c] sm:$0xf]
  %v61 = vld [vmem:[%s0 + $0x90] sm:$0xf]
  %v62 = vld [vmem:[%s0 + $0x94] sm:$0xf]
  %v63 = vld [vmem:[%s0 + $0x98] sm:$0xf]
  %v64 = vld [vmem:[%s0 + $0x9c] sm:$0xf]
  %v65 = vld [vmem:[%s0 + $0xa0] sm:$0xf]
  %v66 = vld [vmem:[%s0 + $0xa4] sm:$0xf]
  %v67 = vld [vmem:[%s0 + $0xa8] sm:$0xf]
  %v68 = vld [vmem:[%s0 + $0xac] sm:$0xf]
  %v69 = vld [vmem:[%s0 + $0xb0] sm:$0xf]
  %v70 = vld [vmem:[%s0 + $0xb4] sm:$0xf]
  %v71 = vld [vmem:[%s0 + $0xb8] sm:$0xf]
  %v72 = vld [vmem:[%s0 + $0xbc] sm:$0xf]
  %v73 = vld [vmem:[%s0 + $0xc0] sm:$0xf]
  %v74 = vld [vmem:[%s0 + $0xc4] sm:$0xf]
  %v75 = vld [vmem:[%s0 + $0xc8] sm:$0xf]
  %v76 = vld [vmem:[%s0 + $0xcc] sm:$0xf]
  %v77 = vld [vmem:[%s0 + $0xd0] sm:$0xf]
  %v78 = vld [vmem:[%s0 + $0xd4] sm:$0xf]
  %v83 = vunpack.c.l.b16 %v21
  %v84 = vunpack.c.h.b16 %v21
  %v85 = vunpack.c.l.b16 %v22
  %v86 = vunpack.c.h.b16 %v22
  %v87 = vunpack.c.l.b16 %v23
  %v88 = vunpack.c.h.b16 %v23
  %v89 = vunpack.c.l.b16 %v24
  %v90 = vunpack.c.h.b16 %v24
  %v91 = vpack.c.b16 %v87, %v83
  %v92 = vpack.c.b16 %v88, %v84
  %v93 = vpack.c.b16 %v89, %v85
  %v94 = vpack.c.b16 %v90, %v86
  %v152 = vunpack.c.l.b16 %v25
  %v153 = vunpack.c.l.b16 %v26
  %v154 = vunpack.c.l.b16 %v27
  %v155 = vunpack.c.l.b16 %v28
  %v156 = vunpack.c.l.b16 %v29
  %v157 = vunpack.c.l.b16 %v30
  %v158 = vunpack.c.l.b16 %v31
  %v159 = vunpack.c.l.b16 %v32
  %v160 = vunpack.c.l.b16 %v33
  %v161 = vunpack.c.l.b16 %v34
  %v162 = vunpack.c.l.b16 %v35
  %v163 = vunpack.c.l.b16 %v36
  %v164 = vunpack.c.l.b16 %v37
  %v165 = vunpack.c.l.b16 %v38
  %v166 = vunpack.c.l.b16 %v39
  %v167 = vunpack.c.l.b16 %v40
  %v168 = vunpack.c.l.b16 %v41
  %v169 = vunpack.c.l.b16 %v42
  %v170 = vunpack.c.l.b16 %v43
  %v171 = vunpack.c.l.b16 %v44
  %v172 = vunpack.c.l.b16 %v45
  %v173 = vunpack.c.l.b16 %v46
  %v174 = vunpack.c.l.b16 %v47
  %v175 = vunpack.c.l.b16 %v48
  %v176 = vunpack.c.l.b16 %v49
  %v177 = vunpack.c.l.b16 %v50
  %v178 = vunpack.c.l.b16 %v51
  %v179 = vunpack.c.l.b16 %v52
  %v180 = vunpack.c.l.b16 %v53
  %v181 = vunpack.c.l.b16 %v54
  %v182 = vunpack.c.l.b16 %v55
  %v183 = vunpack.c.l.b16 %v56
  %v184 = vunpack.c.l.b16 %v57
  %v185 = vunpack.c.l.b16 %v58
  %v186 = vunpack.c.l.b16 %v59
  %v187 = vunpack.c.l.b16 %v60
  %v188 = vunpack.c.l.b16 %v61
  %v189 = vunpack.c.l.b16 %v62
  %v190 = vunpack.c.l.b16 %v63
  %v191 = vunpack.c.l.b16 %v64
  %v192 = vunpack.c.l.b16 %v65
  %v193 = vunpack.c.l.b16 %v66
  %v194 = vunpack.c.l.b16 %v67
  %v195 = vunpack.c.l.b16 %v68
  %v196 = vunpack.c.l.b16 %v69
  %v197 = vunpack.c.l.b16 %v70
  %v198 = vunpack.c.l.b16 %v71
  %v199 = vunpack.c.l.b16 %v72
  %v200 = vunpack.c.l.b16 %v73
  %v201 = vunpack.c.l.b16 %v74
  %v202 = vunpack.c.l.b16 %v75
  %v203 = vunpack.c.l.b16 %v76
  %v204 = vunpack.c.l.b16 %v77
  %v205 = vunpack.c.l.b16 %v78
  %v206 = vpack.c.b16 %v153, %v152
  %v207 = vpack.c.b16 %v155, %v154
  %v208 = vpack.c.b16 %v157, %v156
  %v209 = vpack.c.b16 %v159, %v158
  %v210 = vpack.c.b16 %v161, %v160
  %v211 = vpack.c.b16 %v163, %v162
  %v212 = vpack.c.b16 %v165, %v164
  %v213 = vpack.c.b16 %v167, %v166
  %v214 = vpack.c.b16 %v169, %v168
  %v215 = vpack.c.b16 %v171, %v170
  %v216 = vpack.c.b16 %v173, %v172
  %v217 = vpack.c.b16 %v175, %v174
  %v218 = vpack.c.b16 %v177, %v176
  %v219 = vpack.c.b16 %v179, %v178
  %v220 = vpack.c.b16 %v181, %v180
  %v221 = vpack.c.b16 %v183, %v182
  %v222 = vpack.c.b16 %v185, %v184
  %v223 = vpack.c.b16 %v187, %v186
  %v224 = vpack.c.b16 %v189, %v188
  %v225 = vpack.c.b16 %v191, %v190
  %v226 = vpack.c.b16 %v193, %v192
  %v227 = vpack.c.b16 %v195, %v194
  %v228 = vpack.c.b16 %v197, %v196
  %v229 = vpack.c.b16 %v199, %v198
  %v230 = vpack.c.b16 %v201, %v200
  %v231 = vpack.c.b16 %v203, %v202
  %v232 = vpack.c.b16 %v205, %v204
  %vm260 = vcmask 392192
  %v262 = vsel %vm260, %v94, 0
  %264 = vmatprep.subr.bf16.mxu0 0
  %265 = vmatpush1.bf16.msra.mxu0 %v206
  %266 = vmatprep.subr.bf16.mxu0 0
  %267 = vmatpush1.bf16.msra.mxu0 %v207
  %268 = vmatprep.subr.bf16.mxu0 0
  %269 = vmatpush1.bf16.msra.mxu0 %v208
  %270 = vmatprep.subr.bf16.mxu0 0
  %271 = vmatpush1.bf16.msra.mxu0 %v209
  %272 = vmatprep.subr.bf16.mxu0 0
  %273 = vmatpush1.bf16.msra.mxu0 %v210
  %274 = vmatprep.subr.bf16.mxu0 0
  %275 = vmatpush1.bf16.msra.mxu0 %v211
  %276 = vmatprep.subr.bf16.mxu0 0
  %277 = vmatpush1.bf16.msra.mxu0 %v212
  %278 = vmatprep.subr.bf16.mxu0 0
  %279 = vmatpush1.bf16.msra.mxu0 %v213
  %280 = vmatprep.subr.bf16.mxu0 0
  %281 = vmatpush1.bf16.msra.mxu0 %v214
  %282 = vmatprep.subr.bf16.mxu0 0
  %283 = vmatpush1.bf16.msra.mxu0 %v215
  %284 = vmatprep.subr.bf16.mxu0 0
  %285 = vmatpush1.bf16.msra.mxu0 %v216
  %286 = vmatprep.subr.bf16.mxu0 0
  %287 = vmatpush1.bf16.msra.mxu0 %v217
  %288 = vmatprep.subr.bf16.mxu0 0
  %289 = vmatpush1.bf16.msra.mxu0 %v218
  %290 = vmatprep.subr.bf16.mxu0 0
  %291 = vmatpush1.bf16.msra.mxu0 %v219
  %292 = vmatprep.subr.bf16.mxu0 0
  %293 = vmatpush1.bf16.msra.mxu0 %v220
  %294 = vmatprep.subr.bf16.mxu0 0
  %295 = vmatpush1.bf16.msra.mxu0 %v221
  %296 = vmatprep.mubr.bf16.mxu0 %v92
  %297 = vmatmul.mubr.bf16.gmra.mrb[0].mxu0 %v91
  %v298 = vpop.f32.mrb[0].mxu0
  %v299 = vadd.f32 0.0, %v298
  %v300 = vpop.f32.mrb[0].mxu0
  %v301 = vpop.f32.mrb[0].mxu0
  %v302 = vadd.f32 0.0, %v301
  %v303 = vpop.f32.mrb[0].mxu0
  %304 = vdwg.mxu0
  %305 = vmatprep.subr.bf16.mxu0 0
  %306 = vmatpush1.bf16.msra.mxu0 %v222
  %307 = vmatprep.subr.bf16.mxu0 0
  %308 = vmatpush1.bf16.msra.mxu0 %v223
  %309 = vmatprep.subr.bf16.mxu0 0
  %310 = vmatpush1.bf16.msra.mxu0 %v224
  %311 = vmatprep.subr.bf16.mxu0 0
  %312 = vmatpush1.bf16.msra.mxu0 %v225
  %313 = vmatprep.subr.bf16.mxu0 0
  %314 = vmatpush1.bf16.msra.mxu0 %v226
  %315 = vmatprep.subr.bf16.mxu0 0
  %316 = vmatpush1.bf16.msra.mxu0 %v227
  %317 = vmatprep.subr.bf16.mxu0 0
  %318 = vmatpush1.bf16.msra.mxu0 %v228
  %319 = vmatprep.subr.bf16.mxu0 0
  %320 = vmatpush1.bf16.msra.mxu0 %v229
  %321 = vmatprep.subr.bf16.mxu0 0
  %322 = vmatpush1.bf16.msra.mxu0 %v230
  %323 = vmatprep.subr.bf16.mxu0 0
  %324 = vmatpush1.bf16.msra.mxu0 %v231
  %325 = vmatprep.subr.bf16.mxu0 0
  %326 = vmatpush1.bf16.msra.mxu0 %v232
  %327 = vmatprep.subr.bf16.mxu0 0
  %328 = vmatpush1.bf16.msra.mxu0 0
  %329 = vmatprep.subr.bf16.mxu0 0
  %330 = vmatpush1.bf16.msra.mxu0 0
  %331 = vmatprep.subr.bf16.mxu0 0
  %332 = vmatpush1.bf16.msra.mxu0 0
  %333 = vmatprep.subr.bf16.mxu0 0
  %334 = vmatpush1.bf16.msra.mxu0 0
  %335 = vmatprep.subr.bf16.mxu0 0
  %336 = vmatpush1.bf16.msra.mxu0 0
  %337 = vmatprep.mubr.bf16.mxu0 %v262
  %338 = vmatmul.mubr.bf16.gmra.mrb[0].mxu0 %v93
  %v339 = vpop.f32.mrb[0].mxu0
  %v340 = vadd.f32 %v299, %v339
  %v341 = vpop.f32.mrb[0].mxu0
  %v342 = vpop.f32.mrb[0].mxu0
  %v343 = vadd.f32 %v302, %v342
  %v344 = vpop.f32.mrb[0].mxu0
  %345 = vdwg.mxu0
  %vm346 = vcmask 801792
  %v347 = vsel %vm346, %v340, 0.0
  %348 = vadd.xlane.f32.xlu0 %v347
  %v349 = vpop.xlane.xlu0 %348
  %v350 = vsel %vm346, %v343, 0.0
  %351 = vadd.xlane.f32.xlu0 %v350
  %v352 = vpop.xlane.xlu0 %351
  %v353 = vmul.f32 %v349, 0.010204081
  %v354 = vmul.f32 %v352, 0.010204081
  %v355 = vsub.f32 %v340, %v353
  %v356 = vsub.f32 %v343, %v354
  %v357 = vmul.f32 %v355, %v355
  %v358 = vmul.f32 %v356, %v356
  %v359 = vsel %vm346, %v357, 0.0
  %360 = vadd.xlane.f32.xlu0 %v359
  %v361 = vpop.xlane.xlu0 %360
  %v362 = vsel %vm346, %v358, 0.0
  %363 = vadd.xlane.f32.xlu0 %v362
  %v364 = vpop.xlane.xlu0 %363
  %v365 = vmul.f32 %v361, 0.010204081
  %v366 = vmul.f32 %v364, 0.010204081
  %v367 = vld [vmem:[%s4] sm:$0xff]
  %v368 = vld [vmem:[%s4 + $0x8] sm:$0xff]
  %v369 = vadd.f32 %v365, 1e-05
  %v370 = vadd.f32 %v366, 1e-05
  %v371 = vrsqrt.pop %v369
  %v372 = vrsqrt.pop %v370
  %v373 = vmul.f32 %v367, %v371
  %v374 = vmul.f32 %v368, %v372
  %v375 = vmul.f32 %v353, %v373
  %v376 = vmul.f32 %v354, %v374
  %379 = vrot.lane.b32.xlu0 %v375, 1
  %v380 = vpop.permute.xlu0 %379
  %381 = vrot.lane.b32.xlu0 %v376, 1
  %v382 = vpop.permute.xlu0 %381
  %v385 = vsub.f32 %v367, %v380
  %v386 = vsub.f32 %v368, %v382
  %388 = vset.pattern.permute.xlu0 0
  %389 = vperm.xlu0 %388, %v373
  %v390 = vpop.permute.xlu0 %389
  %393 = vset.pattern.permute.xlu0 0
  %394 = vperm.xlu0 %393, %v374
  %v395 = vpop.permute.xlu0 %394
  %v397 = vmul.f32 %v340, %v390
  %v398 = vmul.f32 %v343, %v395
  %400 = vset.pattern.permute.xlu0 1
  %401 = vperm.xlu0 %400, %v385
  %v402 = vpop.permute.xlu0 %401
  %405 = vset.pattern.permute.xlu0 1
  %406 = vperm.xlu0 %405, %v386
  %v407 = vpop.permute.xlu0 %406
  %v409 = vadd.f32 %v397, %v402
  %v410 = vadd.f32 %v398, %v407
  %v411 = vmax.f32 %v409, 0.0
  %v412 = vmax.f32 %v410, 0.0
  %v413 = vpack.c.bf16 %v412, %v411
  %v414 = vld [vmem:[%s2] sm:$0xff]
  %v415 = vld [vmem:[%s2 + $0x8] sm:$0xff]
  %v416 = vld [vmem:[%s2 + $0x10] sm:$0xff]
  %v417 = vld [vmem:[%s2 + $0x18] sm:$0xff]
  %v418 = vld [vmem:[%s2 + $0x20] sm:$0xff]
  %v419 = vld [vmem:[%s2 + $0x28] sm:$0xff]
  %v420 = vld [vmem:[%s2 + $0x30] sm:$0xff]
  %v421 = vld [vmem:[%s2 + $0x38] sm:$0xff]
  %v422 = vld [vmem:[%s2 + $0x40] sm:$0xff]
  %v423 = vld [vmem:[%s2 + $0x48] sm:$0xff]
  %v424 = vld [vmem:[%s2 + $0x50] sm:$0xff]
  %v425 = vld [vmem:[%s2 + $0x58] sm:$0xff]
  %v426 = vld [vmem:[%s2 + $0x60] sm:$0x11]
  %v440 = vunpack.c.l.b16 %v414
  %v441 = vunpack.c.h.b16 %v414
  %v442 = vunpack.c.l.b16 %v415
  %v443 = vunpack.c.h.b16 %v415
  %v444 = vunpack.c.l.b16 %v416
  %v445 = vunpack.c.h.b16 %v416
  %v446 = vunpack.c.l.b16 %v417
  %v447 = vunpack.c.h.b16 %v417
  %v448 = vunpack.c.l.b16 %v418
  %v449 = vunpack.c.h.b16 %v418
  %v450 = vunpack.c.l.b16 %v419
  %v451 = vunpack.c.h.b16 %v419
  %v452 = vunpack.c.l.b16 %v420
  %v453 = vunpack.c.h.b16 %v420
  %v454 = vunpack.c.l.b16 %v421
  %v455 = vunpack.c.h.b16 %v421
  %v456 = vunpack.c.l.b16 %v422
  %v457 = vunpack.c.h.b16 %v422
  %v458 = vunpack.c.l.b16 %v423
  %v459 = vunpack.c.h.b16 %v423
  %v460 = vunpack.c.l.b16 %v424
  %v461 = vunpack.c.h.b16 %v424
  %v462 = vunpack.c.l.b16 %v425
  %v463 = vunpack.c.h.b16 %v425
  %v464 = vunpack.c.l.b16 %v426
  %v465 = vunpack.c.h.b16 %v426
  %v466 = vpack.c.b16 %v442, %v440
  %v467 = vpack.c.b16 %v443, %v441
  %v468 = vpack.c.b16 %v446, %v444
  %v469 = vpack.c.b16 %v447, %v445
  %v470 = vpack.c.b16 %v450, %v448
  %v471 = vpack.c.b16 %v451, %v449
  %v472 = vpack.c.b16 %v454, %v452
  %v473 = vpack.c.b16 %v455, %v453
  %v474 = vpack.c.b16 %v458, %v456
  %v475 = vpack.c.b16 %v459, %v457
  %v476 = vpack.c.b16 %v462, %v460
  %v477 = vpack.c.b16 %v463, %v461
  %v478 = vpack.c.b16 %v464, %v464
  %v479 = vpack.c.b16 %v465, %v465
  %v493 = vsel %vm346, %v413, 0
  %vm495 = vcmask 1040384
  %v497 = vsel %vm495, %v478, 0
  %v500 = vsel %vm495, %v479, 0
  %502 = vmatprep.subr.bf16.mxu0 %v467
  %503 = vmatpush1.bf16.msra.mxu0 %v466
  %504 = vmatprep.subr.bf16.mxu0 %v469
  %505 = vmatpush1.bf16.msra.mxu0 %v468
  %506 = vmatprep.subr.bf16.mxu0 %v471
  %507 = vmatpush1.bf16.msra.mxu0 %v470
  %508 = vmatprep.subr.bf16.mxu0 %v473
  %509 = vmatpush1.bf16.msra.mxu0 %v472
  %510 = vmatprep.subr.bf16.mxu0 %v475
  %511 = vmatpush1.bf16.msra.mxu0 %v474
  %512 = vmatprep.subr.bf16.mxu0 %v477
  %513 = vmatpush1.bf16.msra.mxu0 %v476
  %514 = vmatprep.subr.bf16.mxu0 %v500
  %515 = vmatpush1.bf16.msra.mxu0 %v497
  %516 = vmatprep.subr.bf16.mxu0 0
  %517 = vmatpush1.bf16.msra.mxu0 0
  %518 = vmatprep.subr.bf16.mxu0 0
  %519 = vmatpush1.bf16.msra.mxu0 0
  %520 = vmatprep.subr.bf16.mxu0 0
  %521 = vmatpush1.bf16.msra.mxu0 0
  %522 = vmatprep.subr.bf16.mxu0 0
  %523 = vmatpush1.bf16.msra.mxu0 0
  %524 = vmatprep.subr.bf16.mxu0 0
  %525 = vmatpush1.bf16.msra.mxu0 0
  %526 = vmatprep.subr.bf16.mxu0 0
  %527 = vmatpush1.bf16.msra.mxu0 0
  %528 = vmatprep.subr.bf16.mxu0 0
  %529 = vmatpush1.bf16.msra.mxu0 0
  %530 = vmatprep.subr.bf16.mxu0 0
  %531 = vmatpush1.bf16.msra.mxu0 0
  %532 = vmatprep.subr.bf16.mxu0 0
  %533 = vmatpush1.bf16.msra.mxu0 0
  %534 = vmatprep.mubr.bf16.mxu0 0
  %535 = vmatmul.mubr.bf16.gmra.mrb[0].mxu0 %v493
  %v536 = vpop.f32.mrb[0].mxu0
  %v537 = vadd.f32 0.0, %v536
  %v538 = vpop.f32.mrb[0].mxu0
  %v539 = vadd.f32 0.0, %v538
  %v540 = vpop.f32.mrb[0].mxu0
  %v541 = vadd.f32 0.0, %v540
  %v542 = vpop.f32.mrb[0].mxu0
  %v543 = vadd.f32 0.0, %v542
  %544 = vdwg.mxu0
  %v545 = vld [vmem:[%s3] sm:$0xf]
  %v546 = vld [vmem:[%s3 + $0x4] sm:$0xf]
  %v547 = vpack.c.bf16 %v541, %v537
  %s548 = scalar_lea.vmem %s3, 8
  %v549 = vld [vmem:[%s548] sm:$0xf]
  %v550 = vld [vmem:[%s548 + $0x4] sm:$0xf]
  %v553 = vunpack.c.l.b16 %v549
  %v554 = vunpack.c.l.b16 %v550
  %v555 = vpack.c.b16 %v554, %v553
  %557 = vrot.lane.b32.xlu0 %v547, 110
  %v558 = vpop.permute.xlu0 %557
  %vm560 = vcmask 130048
  %v562 = vsel %vm560, %v555, 0
  %564 = vmatprep.subr.bf16.mxu0 0
  %565 = vmatpush1.bf16.msra.mxu0 %v558
  %566 = vmatprep.subr.bf16.mxu0 0
  %567 = vmatpush1.bf16.msra.mxu0 0
  %568 = vmatprep.subr.bf16.mxu0 0
  %569 = vmatpush1.bf16.msra.mxu0 0
  %570 = vmatprep.subr.bf16.mxu0 0
  %571 = vmatpush1.bf16.msra.mxu0 0
  %572 = vmatprep.subr.bf16.mxu0 0
  %573 = vmatpush1.bf16.msra.mxu0 0
  %574 = vmatprep.subr.bf16.mxu0 0
  %575 = vmatpush1.bf16.msra.mxu0 0
  %576 = vmatprep.subr.bf16.mxu0 0
  %577 = vmatpush1.bf16.msra.mxu0 0
  %578 = vmatprep.subr.bf16.mxu0 0
  %579 = vmatpush1.bf16.msra.mxu0 0
  %580 = vmatprep.subr.bf16.mxu0 0
  %581 = vmatpush1.bf16.msra.mxu0 0
  %582 = vmatprep.subr.bf16.mxu0 0
  %583 = vmatpush1.bf16.msra.mxu0 0
  %584 = vmatprep.subr.bf16.mxu0 0
  %585 = vmatpush1.bf16.msra.mxu0 0
  %586 = vmatprep.subr.bf16.mxu0 0
  %587 = vmatpush1.bf16.msra.mxu0 0
  %588 = vmatprep.subr.bf16.mxu0 0
  %589 = vmatpush1.bf16.msra.mxu0 0
  %590 = vmatprep.subr.bf16.mxu0 0
  %591 = vmatpush1.bf16.msra.mxu0 0
  %592 = vmatprep.subr.bf16.mxu0 0
  %593 = vmatpush1.bf16.msra.mxu0 0
  %594 = vmatprep.subr.bf16.mxu0 0
  %595 = vmatpush1.bf16.msra.mxu0 0
  %596 = vmatprep.mubr.bf16.mxu0 0
  %597 = vmatmul.mubr.bf16.gmra.mrb[0].mxu0 %v562
  %v598 = vpop.f32.mrb[0].mxu0
  %v599 = vadd.f32 0.0, %v598
  %v600 = vpop.f32.mrb[0].mxu0
  %v601 = vpop.f32.mrb[0].mxu0
  %v602 = vadd.f32 0.0, %v601
  %v603 = vpop.f32.mrb[0].mxu0
  %604 = vdwg.mxu0
  %v607 = vunpack.c.l.b16 %v545
  %v608 = vunpack.c.l.b16 %v546
  %v609 = vpack.c.b16 %v608, %v607
  %v611 = vsel %vm560, %v609, 0
  %613 = vmatprep.subr.bf16.mxu0 0
  %614 = vmatpush1.bf16.msra.mxu0 %v547
  %615 = vmatprep.subr.bf16.mxu0 0
  %616 = vmatpush1.bf16.msra.mxu0 0
  %617 = vmatprep.subr.bf16.mxu0 0
  %618 = vmatpush1.bf16.msra.mxu0 0
  %619 = vmatprep.subr.bf16.mxu0 0
  %620 = vmatpush1.bf16.msra.mxu0 0
  %621 = vmatprep.subr.bf16.mxu0 0
  %622 = vmatpush1.bf16.msra.mxu0 0
  %623 = vmatprep.subr.bf16.mxu0 0
  %624 = vmatpush1.bf16.msra.mxu0 0
  %625 = vmatprep.subr.bf16.mxu0 0
  %626 = vmatpush1.bf16.msra.mxu0 0
  %627 = vmatprep.subr.bf16.mxu0 0
  %628 = vmatpush1.bf16.msra.mxu0 0
  %629 = vmatprep.subr.bf16.mxu0 0
  %630 = vmatpush1.bf16.msra.mxu0 0
  %631 = vmatprep.subr.bf16.mxu0 0
  %632 = vmatpush1.bf16.msra.mxu0 0
  %633 = vmatprep.subr.bf16.mxu0 0
  %634 = vmatpush1.bf16.msra.mxu0 0
  %635 = vmatprep.subr.bf16.mxu0 0
  %636 = vmatpush1.bf16.msra.mxu0 0
  %637 = vmatprep.subr.bf16.mxu0 0
  %638 = vmatpush1.bf16.msra.mxu0 0
  %639 = vmatprep.subr.bf16.mxu0 0
  %640 = vmatpush1.bf16.msra.mxu0 0
  %641 = vmatprep.subr.bf16.mxu0 0
  %642 = vmatpush1.bf16.msra.mxu0 0
  %643 = vmatprep.subr.bf16.mxu0 0
  %644 = vmatpush1.bf16.msra.mxu0 0
  %645 = vmatprep.mubr.bf16.mxu0 0
  %646 = vmatmul.mubr.bf16.gmra.mrb[0].mxu0 %v611
  %v647 = vpop.f32.mrb[0].mxu0
  %v648 = vadd.f32 %v599, %v647
  %v649 = vpop.f32.mrb[0].mxu0
  %v650 = vpop.f32.mrb[0].mxu0
  %v651 = vadd.f32 %v602, %v650
  %v652 = vpop.f32.mrb[0].mxu0
  %653 = vdwg.mxu0
  %s654 = scalar_lea.vmem %s3, 16
  %v655 = vld [vmem:[%s654] sm:$0xf]
  %v656 = vld [vmem:[%s654 + $0x4] sm:$0xf]
  %v659 = vunpack.c.l.b16 %v655
  %v660 = vunpack.c.l.b16 %v656
  %v661 = vpack.c.b16 %v660, %v659
  %662 = vrot.lane.b32.xlu0 %v547, 92
  %v663 = vpop.permute.xlu0 %662
  %v666 = vsel %vm560, %v661, 0
  %668 = vmatprep.subr.bf16.mxu0 0
  %669 = vmatpush1.bf16.msra.mxu0 %v663
  %670 = vmatprep.subr.bf16.mxu0 0
  %671 = vmatpush1.bf16.msra.mxu0 0
  %672 = vmatprep.subr.bf16.mxu0 0
  %673 = vmatpush1.bf16.msra.mxu0 0
  %674 = vmatprep.subr.bf16.mxu0 0
  %675 = vmatpush1.bf16.msra.mxu0 0
  %676 = vmatprep.subr.bf16.mxu0 0
  %677 = vmatpush1.bf16.msra.mxu0 0
  %678 = vmatprep.subr.bf16.mxu0 0
  %679 = vmatpush1.bf16.msra.mxu0 0
  %680 = vmatprep.subr.bf16.mxu0 0
  %681 = vmatpush1.bf16.msra.mxu0 0
  %682 = vmatprep.subr.bf16.mxu0 0
  %683 = vmatpush1.bf16.msra.mxu0 0
  %684 = vmatprep.subr.bf16.mxu0 0
  %685 = vmatpush1.bf16.msra.mxu0 0
  %686 = vmatprep.subr.bf16.mxu0 0
  %687 = vmatpush1.bf16.msra.mxu0 0
  %688 = vmatprep.subr.bf16.mxu0 0
  %689 = vmatpush1.bf16.msra.mxu0 0
  %690 = vmatprep.subr.bf16.mxu0 0
  %691 = vmatpush1.bf16.msra.mxu0 0
  %692 = vmatprep.subr.bf16.mxu0 0
  %693 = vmatpush1.bf16.msra.mxu0 0
  %694 = vmatprep.subr.bf16.mxu0 0
  %695 = vmatpush1.bf16.msra.mxu0 0
  %696 = vmatprep.subr.bf16.mxu0 0
  %697 = vmatpush1.bf16.msra.mxu0 0
  %698 = vmatprep.subr.bf16.mxu0 0
  %699 = vmatpush1.bf16.msra.mxu0 0
  %700 = vmatprep.mubr.bf16.mxu0 0
  %701 = vmatmul.mubr.bf16.gmra.mrb[0].mxu0 %v666
  %v702 = vpop.f32.mrb[0].mxu0
  %v703 = vadd.f32 0.0, %v702
  %v704 = vpop.f32.mrb[0].mxu0
  %v705 = vpop.f32.mrb[0].mxu0
  %v706 = vadd.f32 0.0, %v705
  %v707 = vpop.f32.mrb[0].mxu0
  %708 = vdwg.mxu0
  %v709 = vadd.f32 %v648, %v703
  %v710 = vadd.f32 %v651, %v706
  %s711 = scalar_lea.vmem %s3, 24
  %v712 = vld [vmem:[%s711] sm:$0xf]
  %v713 = vld [vmem:[%s711 + $0x4] sm:$0xf]
  %v716 = vunpack.c.l.b16 %v712
  %v717 = vunpack.c.l.b16 %v713
  %v718 = vpack.c.b16 %v717, %v716
  %719 = vrot.lane.b32.xlu0 %v547, 74
  %v720 = vpop.permute.xlu0 %719
  %v723 = vsel %vm560, %v718, 0
  %725 = vmatprep.subr.bf16.mxu0 0
  %726 = vmatpush1.bf16.msra.mxu0 %v720
  %727 = vmatprep.subr.bf16.mxu0 0
  %728 = vmatpush1.bf16.msra.mxu0 0
  %729 = vmatprep.subr.bf16.mxu0 0
  %730 = vmatpush1.bf16.msra.mxu0 0
  %731 = vmatprep.subr.bf16.mxu0 0
  %732 = vmatpush1.bf16.msra.mxu0 0
  %733 = vmatprep.subr.bf16.mxu0 0
  %734 = vmatpush1.bf16.msra.mxu0 0
  %735 = vmatprep.subr.bf16.mxu0 0
  %736 = vmatpush1.bf16.msra.mxu0 0
  %737 = vmatprep.subr.bf16.mxu0 0
  %738 = vmatpush1.bf16.msra.mxu0 0
  %739 = vmatprep.subr.bf16.mxu0 0
  %740 = vmatpush1.bf16.msra.mxu0 0
  %741 = vmatprep.subr.bf16.mxu0 0
  %742 = vmatpush1.bf16.msra.mxu0 0
  %743 = vmatprep.subr.bf16.mxu0 0
  %744 = vmatpush1.bf16.msra.mxu0 0
  %745 = vmatprep.subr.bf16.mxu0 0
  %746 = vmatpush1.bf16.msra.mxu0 0
  %747 = vmatprep.subr.bf16.mxu0 0
  %748 = vmatpush1.bf16.msra.mxu0 0
  %749 = vmatprep.subr.bf16.mxu0 0
  %750 = vmatpush1.bf16.msra.mxu0 0
  %751 = vmatprep.subr.bf16.mxu0 0
  %752 = vmatpush1.bf16.msra.mxu0 0
  %753 = vmatprep.subr.bf16.mxu0 0
  %754 = vmatpush1.bf16.msra.mxu0 0
  %755 = vmatprep.subr.bf16.mxu0 0
  %756 = vmatpush1.bf16.msra.mxu0 0
  %757 = vmatprep.mubr.bf16.mxu0 0
  %758 = vmatmul.mubr.bf16.gmra.mrb[0].mxu0 %v723
  %v759 = vpop.f32.mrb[0].mxu0
  %v760 = vadd.f32 0.0, %v759
  %v761 = vpop.f32.mrb[0].mxu0
  %v762 = vpop.f32.mrb[0].mxu0
  %v763 = vadd.f32 0.0, %v762
  %v764 = vpop.f32.mrb[0].mxu0
  %765 = vdwg.mxu0
  %v766 = vadd.f32 %v709, %v760
  %v767 = vadd.f32 %v710, %v763
  %s768 = scalar_lea.vmem %s3, 32
  %v769 = vld [vmem:[%s768] sm:$0xf]
  %v770 = vld [vmem:[%s768 + $0x4] sm:$0xf]
  %v773 = vunpack.c.l.b16 %v769
  %v774 = vunpack.c.l.b16 %v770
  %v775 = vpack.c.b16 %v774, %v773
  %776 = vrot.lane.b32.xlu0 %v547, 56
  %v777 = vpop.permute.xlu0 %776
  %v780 = vsel %vm560, %v775, 0
  %782 = vmatprep.subr.bf16.mxu0 0
  %783 = vmatpush1.bf16.msra.mxu0 %v777
  %784 = vmatprep.subr.bf16.mxu0 0
  %785 = vmatpush1.bf16.msra.mxu0 0
  %786 = vmatprep.subr.bf16.mxu0 0
  %787 = vmatpush1.bf16.msra.mxu0 0
  %788 = vmatprep.subr.bf16.mxu0 0
  %789 = vmatpush1.bf16.msra.mxu0 0
  %790 = vmatprep.subr.bf16.mxu0 0
  %791 = vmatpush1.bf16.msra.mxu0 0
  %792 = vmatprep.subr.bf16.mxu0 0
  %793 = vmatpush1.bf16.msra.mxu0 0
  %794 = vmatprep.subr.bf16.mxu0 0
  %795 = vmatpush1.bf16.msra.mxu0 0
  %796 = vmatprep.subr.bf16.mxu0 0
  %797 = vmatpush1.bf16.msra.mxu0 0
  %798 = vmatprep.subr.bf16.mxu0 0
  %799 = vmatpush1.bf16.msra.mxu0 0
  %800 = vmatprep.subr.bf16.mxu0 0
  %801 = vmatpush1.bf16.msra.mxu0 0
  %802 = vmatprep.subr.bf16.mxu0 0
  %803 = vmatpush1.bf16.msra.mxu0 0
  %804 = vmatprep.subr.bf16.mxu0 0
  %805 = vmatpush1.bf16.msra.mxu0 0
  %806 = vmatprep.subr.bf16.mxu0 0
  %807 = vmatpush1.bf16.msra.mxu0 0
  %808 = vmatprep.subr.bf16.mxu0 0
  %809 = vmatpush1.bf16.msra.mxu0 0
  %810 = vmatprep.subr.bf16.mxu0 0
  %811 = vmatpush1.bf16.msra.mxu0 0
  %812 = vmatprep.subr.bf16.mxu0 0
  %813 = vmatpush1.bf16.msra.mxu0 0
  %814 = vmatprep.mubr.bf16.mxu0 0
  %815 = vmatmul.mubr.bf16.gmra.mrb[0].mxu0 %v780
  %v816 = vpop.f32.mrb[0].mxu0
  %v817 = vadd.f32 0.0, %v816
  %v818 = vpop.f32.mrb[0].mxu0
  %v819 = vpop.f32.mrb[0].mxu0
  %v820 = vadd.f32 0.0, %v819
  %v821 = vpop.f32.mrb[0].mxu0
  %822 = vdwg.mxu0
  %v823 = vadd.f32 %v766, %v817
  %v824 = vadd.f32 %v767, %v820
  %s825 = scalar_lea.vmem %s3, 40
  %v826 = vld [vmem:[%s825] sm:$0xf]
  %v827 = vld [vmem:[%s825 + $0x4] sm:$0xf]
  %v830 = vunpack.c.l.b16 %v826
  %v831 = vunpack.c.l.b16 %v827
  %v832 = vpack.c.b16 %v831, %v830
  %833 = vrot.lane.b32.xlu0 %v547, 38
  %v834 = vpop.permute.xlu0 %833
  %v837 = vsel %vm560, %v832, 0
  %839 = vmatprep.subr.bf16.mxu0 0
  %840 = vmatpush1.bf16.msra.mxu0 %v834
  %841 = vmatprep.subr.bf16.mxu0 0
  %842 = vmatpush1.bf16.msra.mxu0 0
  %843 = vmatprep.subr.bf16.mxu0 0
  %844 = vmatpush1.bf16.msra.mxu0 0
  %845 = vmatprep.subr.bf16.mxu0 0
  %846 = vmatpush1.bf16.msra.mxu0 0
  %847 = vmatprep.subr.bf16.mxu0 0
  %848 = vmatpush1.bf16.msra.mxu0 0
  %849 = vmatprep.subr.bf16.mxu0 0
  %850 = vmatpush1.bf16.msra.mxu0 0
  %851 = vmatprep.subr.bf16.mxu0 0
  %852 = vmatpush1.bf16.msra.mxu0 0
  %853 = vmatprep.subr.bf16.mxu0 0
  %854 = vmatpush1.bf16.msra.mxu0 0
  %855 = vmatprep.subr.bf16.mxu0 0
  %856 = vmatpush1.bf16.msra.mxu0 0
  %857 = vmatprep.subr.bf16.mxu0 0
  %858 = vmatpush1.bf16.msra.mxu0 0
  %859 = vmatprep.subr.bf16.mxu0 0
  %860 = vmatpush1.bf16.msra.mxu0 0
  %861 = vmatprep.subr.bf16.mxu0 0
  %862 = vmatpush1.bf16.msra.mxu0 0
  %863 = vmatprep.subr.bf16.mxu0 0
  %864 = vmatpush1.bf16.msra.mxu0 0
  %865 = vmatprep.subr.bf16.mxu0 0
  %866 = vmatpush1.bf16.msra.mxu0 0
  %867 = vmatprep.subr.bf16.mxu0 0
  %868 = vmatpush1.bf16.msra.mxu0 0
  %869 = vmatprep.subr.bf16.mxu0 0
  %870 = vmatpush1.bf16.msra.mxu0 0
  %871 = vmatprep.mubr.bf16.mxu0 0
  %872 = vmatmul.mubr.bf16.gmra.mrb[0].mxu0 %v837
  %v873 = vpop.f32.mrb[0].mxu0
  %v874 = vadd.f32 0.0, %v873
  %v875 = vpop.f32.mrb[0].mxu0
  %v876 = vpop.f32.mrb[0].mxu0
  %v877 = vadd.f32 0.0, %v876
  %v878 = vpop.f32.mrb[0].mxu0
  %879 = vdwg.mxu0
  %v880 = vadd.f32 %v823, %v874
  %v881 = vadd.f32 %v824, %v877
  %s882 = scalar_lea.vmem %s3, 48
  %v883 = vld [vmem:[%s882] sm:$0xf]
  %v884 = vld [vmem:[%s882 + $0x4] sm:$0xf]
  %v887 = vunpack.c.l.b16 %v883
  %v888 = vunpack.c.l.b16 %v884
  %v889 = vpack.c.b16 %v888, %v887
  %890 = vrot.lane.b32.xlu0 %v547, 20
  %v891 = vpop.permute.xlu0 %890
  %v894 = vsel %vm560, %v889, 0
  %896 = vmatprep.subr.bf16.mxu0 0
  %897 = vmatpush1.bf16.msra.mxu0 %v891
  %898 = vmatprep.subr.bf16.mxu0 0
  %899 = vmatpush1.bf16.msra.mxu0 0
  %900 = vmatprep.subr.bf16.mxu0 0
  %901 = vmatpush1.bf16.msra.mxu0 0
  %902 = vmatprep.subr.bf16.mxu0 0
  %903 = vmatpush1.bf16.msra.mxu0 0
  %904 = vmatprep.subr.bf16.mxu0 0
  %905 = vmatpush1.bf16.msra.mxu0 0
  %906 = vmatprep.subr.bf16.mxu0 0
  %907 = vmatpush1.bf16.msra.mxu0 0
  %908 = vmatprep.subr.bf16.mxu0 0
  %909 = vmatpush1.bf16.msra.mxu0 0
  %910 = vmatprep.subr.bf16.mxu0 0
  %911 = vmatpush1.bf16.msra.mxu0 0
  %912 = vmatprep.subr.bf16.mxu0 0
  %913 = vmatpush1.bf16.msra.mxu0 0
  %914 = vmatprep.subr.bf16.mxu0 0
  %915 = vmatpush1.bf16.msra.mxu0 0
  %916 = vmatprep.subr.bf16.mxu0 0
  %917 = vmatpush1.bf16.msra.mxu0 0
  %918 = vmatprep.subr.bf16.mxu0 0
  %919 = vmatpush1.bf16.msra.mxu0 0
  %920 = vmatprep.subr.bf16.mxu0 0
  %921 = vmatpush1.bf16.msra.mxu0 0
  %922 = vmatprep.subr.bf16.mxu0 0
  %923 = vmatpush1.bf16.msra.mxu0 0
  %924 = vmatprep.subr.bf16.mxu0 0
  %925 = vmatpush1.bf16.msra.mxu0 0
  %926 = vmatprep.subr.bf16.mxu0 0
  %927 = vmatpush1.bf16.msra.mxu0 0
  %928 = vmatprep.mubr.bf16.mxu0 0
  %929 = vmatmul.mubr.bf16.gmra.mrb[0].mxu0 %v894
  %v930 = vpop.f32.mrb[0].mxu0
  %v931 = vadd.f32 0.0, %v930
  %v932 = vpop.f32.mrb[0].mxu0
  %v933 = vpop.f32.mrb[0].mxu0
  %v934 = vadd.f32 0.0, %v933
  %v935 = vpop.f32.mrb[0].mxu0
  %936 = vdwg.mxu0
  %v937 = vadd.f32 %v880, %v931
  %v938 = vadd.f32 %v881, %v934
  %s939 = scalar_lea.vmem %s3, 56
  %v940 = vld [vmem:[%s939] sm:$0xf]
  %v941 = vld [vmem:[%s939 + $0x4] sm:$0xf]
  %v942 = vpack.c.bf16 %v543, %v539
  %v945 = vunpack.c.l.b16 %v940
  %v946 = vunpack.c.l.b16 %v941
  %v947 = vpack.c.b16 %v946, %v945
  %949 = vrot.lane.b32.xlu0 %v547, 2
  %v950 = vpop.permute.xlu0 %949
  %951 = vrot.lane.b32.xlu0 %v942, 2
  %v952 = vpop.permute.xlu0 %951
  %vm953 = vcmask 15360
  %v954 = vsel %vm953, %v950, %v952
  %v957 = vsel %vm560, %v947, 0
  %959 = vmatprep.subr.bf16.mxu0 0
  %960 = vmatpush1.bf16.msra.mxu0 %v954
  %961 = vmatprep.subr.bf16.mxu0 0
  %962 = vmatpush1.bf16.msra.mxu0 0
  %963 = vmatprep.subr.bf16.mxu0 0
  %964 = vmatpush1.bf16.msra.mxu0 0
  %965 = vmatprep.subr.bf16.mxu0 0
  %966 = vmatpush1.bf16.msra.mxu0 0
  %967 = vmatprep.subr.bf16.mxu0 0
  %968 = vmatpush1.bf16.msra.mxu0 0
  %969 = vmatprep.subr.bf16.mxu0 0
  %970 = vmatpush1.bf16.msra.mxu0 0
  %971 = vmatprep.subr.bf16.mxu0 0
  %972 = vmatpush1.bf16.msra.mxu0 0
  %973 = vmatprep.subr.bf16.mxu0 0
  %974 = vmatpush1.bf16.msra.mxu0 0
  %975 = vmatprep.subr.bf16.mxu0 0
  %976 = vmatpush1.bf16.msra.mxu0 0
  %977 = vmatprep.subr.bf16.mxu0 0
  %978 = vmatpush1.bf16.msra.mxu0 0
  %979 = vmatprep.subr.bf16.mxu0 0
  %980 = vmatpush1.bf16.msra.mxu0 0
  %981 = vmatprep.subr.bf16.mxu0 0
  %982 = vmatpush1.bf16.msra.mxu0 0
  %983 = vmatprep.subr.bf16.mxu0 0
  %984 = vmatpush1.bf16.msra.mxu0 0
  %985 = vmatprep.subr.bf16.mxu0 0
  %986 = vmatpush1.bf16.msra.mxu0 0
  %987 = vmatprep.subr.bf16.mxu0 0
  %988 = vmatpush1.bf16.msra.mxu0 0
  %989 = vmatprep.subr.bf16.mxu0 0
  %990 = vmatpush1.bf16.msra.mxu0 0
  %991 = vmatprep.mubr.bf16.mxu0 0
  %992 = vmatmul.mubr.bf16.gmra.mrb[0].mxu0 %v957
  %v993 = vpop.f32.mrb[0].mxu0
  %v994 = vadd.f32 0.0, %v993
  %v995 = vpop.f32.mrb[0].mxu0
  %v996 = vpop.f32.mrb[0].mxu0
  %v997 = vadd.f32 0.0, %v996
  %v998 = vpop.f32.mrb[0].mxu0
  %999 = vdwg.mxu0
  %v1000 = vadd.f32 %v937, %v994
  %v1001 = vadd.f32 %v938, %v997
  %s1002 = scalar_lea.vmem %s3, 64
  %v1003 = vld [vmem:[%s1002] sm:$0xf]
  %v1004 = vld [vmem:[%s1002 + $0x4] sm:$0xf]
  %v1007 = vunpack.c.l.b16 %v1003
  %v1008 = vunpack.c.l.b16 %v1004
  %v1009 = vpack.c.b16 %v1008, %v1007
  %1010 = vrot.lane.b32.xlu0 %v942, 112
  %v1011 = vpop.permute.xlu0 %1010
  %v1014 = vsel %vm560, %v1009, 0
  %1016 = vmatprep.subr.bf16.mxu0 0
  %1017 = vmatpush1.bf16.msra.mxu0 %v1011
  %1018 = vmatprep.subr.bf16.mxu0 0
  %1019 = vmatpush1.bf16.msra.mxu0 0
  %1020 = vmatprep.subr.bf16.mxu0 0
  %1021 = vmatpush1.bf16.msra.mxu0 0
  %1022 = vmatprep.subr.bf16.mxu0 0
  %1023 = vmatpush1.bf16.msra.mxu0 0
  %1024 = vmatprep.subr.bf16.mxu0 0
  %1025 = vmatpush1.bf16.msra.mxu0 0
  %1026 = vmatprep.subr.bf16.mxu0 0
  %1027 = vmatpush1.bf16.msra.mxu0 0
  %1028 = vmatprep.subr.bf16.mxu0 0
  %1029 = vmatpush1.bf16.msra.mxu0 0
  %1030 = vmatprep.subr.bf16.mxu0 0
  %1031 = vmatpush1.bf16.msra.mxu0 0
  %1032 = vmatprep.subr.bf16.mxu0 0
  %1033 = vmatpush1.bf16.msra.mxu0 0
  %1034 = vmatprep.subr.bf16.mxu0 0
  %1035 = vmatpush1.bf16.msra.mxu0 0
  %1036 = vmatprep.subr.bf16.mxu0 0
  %1037 = vmatpush1.bf16.msra.mxu0 0
  %1038 = vmatprep.subr.bf16.mxu0 0
  %1039 = vmatpush1.bf16.msra.mxu0 0
  %1040 = vmatprep.subr.bf16.mxu0 0
  %1041 = vmatpush1.bf16.msra.mxu0 0
  %1042 = vmatprep.subr.bf16.mxu0 0
  %1043 = vmatpush1.bf16.msra.mxu0 0
  %1044 = vmatprep.subr.bf16.mxu0 0
  %1045 = vmatpush1.bf16.msra.mxu0 0
  %1046 = vmatprep.subr.bf16.mxu0 0
  %1047 = vmatpush1.bf16.msra.mxu0 0
  %1048 = vmatprep.mubr.bf16.mxu0 0
  %1049 = vmatmul.mubr.bf16.gmra.mrb[0].mxu0 %v1014
  %v1050 = vpop.f32.mrb[0].mxu0
  %v1051 = vadd.f32 0.0, %v1050
  %v1052 = vpop.f32.mrb[0].mxu0
  %v1053 = vpop.f32.mrb[0].mxu0
  %v1054 = vadd.f32 0.0, %v1053
  %v1055 = vpop.f32.mrb[0].mxu0
  %1056 = vdwg.mxu0
  %v1057 = vadd.f32 %v1000, %v1051
  %v1058 = vadd.f32 %v1001, %v1054
  %vm1059 = vcmask 146432
  %v1060 = vsel %vm1059, %v1057, 0.0
  %1061 = vadd.xlane.f32.xlu0 %v1060
  %v1062 = vpop.xlane.xlu0 %1061
  %v1063 = vsel %vm1059, %v1058, 0.0
  %1064 = vadd.xlane.f32.xlu0 %v1063
  %v1065 = vpop.xlane.xlu0 %1064
  %v1066 = vmul.f32 %v1062, 0.055555556
  %v1067 = vmul.f32 %v1065, 0.055555556
  %v1068 = vsub.f32 %v1057, %v1066
  %v1069 = vsub.f32 %v1058, %v1067
  %v1070 = vmul.f32 %v1068, %v1068
  %v1071 = vmul.f32 %v1069, %v1069
  %v1072 = vsel %vm1059, %v1070, 0.0
  %1073 = vadd.xlane.f32.xlu0 %v1072
  %v1074 = vpop.xlane.xlu0 %1073
  %v1075 = vsel %vm1059, %v1071, 0.0
  %1076 = vadd.xlane.f32.xlu0 %v1075
  %v1077 = vpop.xlane.xlu0 %1076
  %v1078 = vmul.f32 %v1074, 0.055555556
  %v1079 = vmul.f32 %v1077, 0.055555556
  %v1080 = vadd.f32 %v1078, 1e-05
  %v1081 = vadd.f32 %v1079, 1e-05
  %v1082 = vrsqrt.pop %v1080
  %v1083 = vrsqrt.pop %v1081
  %v1084 = vmul.f32 %v367, %v1082
  %v1085 = vmul.f32 %v368, %v1083
  %v1086 = vmul.f32 %v1066, %v1084
  %v1087 = vmul.f32 %v1067, %v1085
  %1090 = vrot.lane.b32.xlu0 %v1086, 1
  %v1091 = vpop.permute.xlu0 %1090
  %1092 = vrot.lane.b32.xlu0 %v1087, 1
  %v1093 = vpop.permute.xlu0 %1092
  %v1096 = vsub.f32 %v367, %v1091
  %v1097 = vsub.f32 %v368, %v1093
  %1099 = vset.pattern.permute.xlu0 2
  %1100 = vperm.xlu0 %1099, %v1084
  %v1101 = vpop.permute.xlu0 %1100
  %1104 = vset.pattern.permute.xlu0 2
  %1105 = vperm.xlu0 %1104, %v1085
  %v1106 = vpop.permute.xlu0 %1105
  %v1108 = vmul.f32 %v1057, %v1101
  %v1109 = vmul.f32 %v1058, %v1106
  %1111 = vset.pattern.permute.xlu0 3
  %1112 = vperm.xlu0 %1111, %v1096
  %v1113 = vpop.permute.xlu0 %1112
  %1116 = vset.pattern.permute.xlu0 3
  %1117 = vperm.xlu0 %1116, %v1097
  %v1118 = vpop.permute.xlu0 %1117
  %v1120 = vadd.f32 %v1108, %v1113
  %v1121 = vadd.f32 %v1109, %v1118
  %v1122 = vmax.f32 %v1120, 0.0
  %v1123 = vmax.f32 %v1121, 0.0
  %vm1124 = vcmask 72704
  %1125 = vst.msk [vmem:[%s5] sm:$0xff] %vm1124, %v1122
  %1126 = vst.msk [vmem:[%s5 + $0x8] sm:$0xff] %vm1124, %v1123
  %1129 = vrot.lane.b32.xlu0 %v1122, 119
  %v1130 = vpop.permute.xlu0 %1129
  %1131 = vrot.lane.b32.xlu0 %v1123, 119
  %v1132 = vpop.permute.xlu0 %1131
  %s1135 = scalar_lea.vmem %s5, 16
  %1136 = vst.msk [vmem:[%s1135] sm:$0xff] %vm1124, %v1130
  %1137 = vst.msk [vmem:[%s1135 + $0x8] sm:$0xff] %vm1124, %v1132
  // Predicated region
  $region22: #{simple_convnet_forward.1} parent=0 // pred_check
    _
  $region23: #{simple_convnet_forward.1} parent=0 // pred_check_branch
    %1139 = sbr.rel (0) target = $region25
  $region24: #{simple_convnet_forward.1} parent=0 // pred_region
    _
  $region25: #{simple_convnet_forward.1} parent=0 // pred_fallthru
    _
  // Predicated region
  $region26: #{simple_convnet_forward.1} parent=0 // pred_check
    _
  $region27: #{simple_convnet_forward.1} parent=0 // pred_check_branch
    %1141 = sbr.rel (0) target = $region29
  $region28: #{simple_convnet_forward.1} parent=0 // pred_region
    _
  $region29: #{simple_convnet_forward.1} parent=0 // pred_fallthru
    _

</llo_original>
